<compile_context>
chip_gen: v7x
topology: tpu7x:2x2x1
jax: 0.10.0
libtpu: 0.0.40
codegen_flags: <defaults>
</compile_context>

<pallas_src>
import jax
import jax.numpy as jnp
from jax.experimental import pallas as pl
from jax.experimental.pallas import tpu as pltpu


def _attention_kernel(scale_ref, q_ref, k_ref, v_ref, o_ref):
    # scale_ref: (1,) f32 scalar-prefetch ref in SMEM (inv_scale_factor)
    # q/k/v/o_ref: (Bt, S, D) VMEM tiles for the current batch block
    Bt, S, D = q_ref.shape
    P = Bt * S

    inv_scale = scale_ref[0]
    r = 1.0 / inv_scale  # scalar reciprocal, hoisted once per grid step

    # Block-diagonal packing: flatten the Bt batch elements along the sublane
    # axis so the score tile is lane-dense (P x P) and the MXU sees one big
    # matmul instead of Bt tiny (S x S) ones.
    q = q_ref[...].reshape(P, D)
    k = k_ref[...].reshape(P, D)
    v = v_ref[...].reshape(P, D)

    # scores: contract on the last dim of both operands (no explicit k.T /
    # XLU transpose of a lane-narrow tile).
    s = jax.lax.dot_general(
        q, k,
        dimension_numbers=(((1,), (1,)), ((), ())),
        preferred_element_type=jnp.float32,
    ) * r  # (P, P)

    if Bt > 1:
        # Mask cross-batch entries to -inf BEFORE the row max so the softmax
        # denominator only sees within-batch scores (no batch mixing).
        row_b = jax.lax.broadcasted_iota(jnp.int32, (P, P), 0) // S
        col_b = jax.lax.broadcasted_iota(jnp.int32, (P, P), 1) // S
        s = jnp.where(row_b == col_b, s, -jnp.inf)

    # numerically-stable softmax along last dim
    m = jnp.max(s, axis=-1, keepdims=True)
    p = jnp.exp(s - m)              # masked entries -> exp(-inf) == 0
    l = jnp.sum(p, axis=-1, keepdims=True)
    # approx reciprocal on the EUP (otherwise-idle slot) + one Newton-Raphson
    # step for full f32 accuracy; avoids a vector divide on the VALU.
    inv_l = pl.reciprocal(l, approx=True)
    inv_l = inv_l * (2.0 - l * inv_l)
    p = p * inv_l

    # dropout with p == 0.0 is the identity; nothing to do here.
    # TODO(synk): if dropout_p > 0 were required, build a keep-mask in-kernel
    # with pltpu.prng_seed + pltpu.prng_random_bits.

    o = jax.lax.dot_general(
        p.astype(v.dtype), v,
        dimension_numbers=(((1,), (0,)), ((), ())),
        preferred_element_type=jnp.float32,
    )  # (P, D)
    o_ref[...] = o.reshape(Bt, S, D).astype(o_ref.dtype)


def _choose_bt(B, S):
    """Batch-block size: pack up to 256 rows per MXU tile, keep grid >= 2 when
    B >= 2 so v7x's second TensorCore gets work."""
    if B == 1:
        return 1
    pack_target = max(1, 256 // S)          # Bt*S <= 256 (v6e/v7x MXU width)
    best = 1
    cap = min(B // 2, pack_target)          # grid = B // Bt >= 2
    for bt in range(1, cap + 1):
        if B % bt == 0:
            best = bt
    return best


def attention(query, key, value, inv_scale_factor, dropout_p=0.0):
    """query/key/value: (B, S, D) float32.  Returns (B, S, D) float32."""
    assert dropout_p == 0.0, "only dropout_p == 0.0 supported (matches test)"
    B, S, D = query.shape

    Bt = _choose_bt(B, S)
    grid = (B // Bt,)
    P = Bt * S

    scale = jnp.asarray(inv_scale_factor, jnp.float32).reshape((1,))

    blk = pl.BlockSpec((Bt, S, D), lambda b, scale_ref: (b, 0, 0))

    steps = grid[0]
    flops = steps * 4 * P * P * D         # two packed matmuls, 2*M*N*K each
    transcendentals = steps * P * P       # exp in softmax
    bytes_accessed = 4 * B * S * D * 4    # q, k, v, o in f32

    return pl.pallas_call(
        _attention_kernel,
        out_shape=jax.ShapeDtypeStruct((B, S, D), query.dtype),
        grid_spec=pltpu.PrefetchScalarGridSpec(
            num_scalar_prefetch=1,
            grid=grid,
            in_specs=[blk, blk, blk],
            out_specs=blk,
        ),
        compiler_params=pltpu.CompilerParams(
            dimension_semantics=("parallel",)),
        cost_estimate=pl.CostEstimate(
            flops=flops,
            transcendentals=transcendentals,
            bytes_accessed=bytes_accessed,
        ),
    )(scale, query, key, value)

    # TODO(synk): if S grows beyond a few hundred, switch to a flash-attention
    # style (q-tile x kv-tile) grid with online softmax to keep VMEM flat.


def _reference(query, key, value, inv_scale_factor):
    qk = jnp.einsum("bqd,bkd->bqk", query, key) / inv_scale_factor
    p = jax.nn.softmax(qk, axis=-1)
    return jnp.einsum("bqk,bkd->bqd", p, value)


if __name__ == "__main__":
    rng = jax.random.PRNGKey(0)

    # Shape matching the PyTorch test tensors.
    B, S, D = 1, 16, 256
    kq, kk, kv = jax.random.split(rng, 3)
    query = jax.random.normal(kq, (B, S, D), dtype=jnp.float32)
    key = jax.random.normal(kk, (B, S, D), dtype=jnp.float32)
    value = jax.random.normal(kv, (B, S, D), dtype=jnp.float32)
    inv_scale_factor = jnp.float32(1.0)
    dropout_p = 0.0

    out = attention(query, key, value, inv_scale_factor, dropout_p)
    out = jax.block_until_ready(out)
    ref = _reference(query, key, value, inv_scale_factor)
    assert out.shape == (B, S, D)
    assert jnp.allclose(out, ref, atol=1e-4, rtol=1e-4), "mismatch vs reference (B=1)"

    # Also exercise the packed + multi-step (v7x two-TC) path:
    # B=8 -> Bt=4 (packed 64 rows), grid=(2,).
    B2 = 8
    kq2, kk2, kv2 = jax.random.split(jax.random.PRNGKey(1), 3)
    q2 = jax.random.normal(kq2, (B2, S, D), dtype=jnp.float32)
    k2 = jax.random.normal(kk2, (B2, S, D), dtype=jnp.float32)
    v2 = jax.random.normal(kv2, (B2, S, D), dtype=jnp.float32)
    inv2 = jnp.float32(16.0)
    out2 = jax.block_until_ready(attention(q2, k2, v2, inv2, dropout_p))
    ref2 = _reference(q2, k2, v2, inv2)
    assert jnp.allclose(out2, ref2, atol=1e-4, rtol=1e-4), "mismatch vs reference (B=8)"

    print("KERNEL_OK")
</pallas_src>

<mosaic_0001>
module attributes {stable_mosaic.version = 11 : i64} {
  func.func @_attention_kernel(%arg0: i32, %arg1: memref<1xf32, #tpu.memory_space<smem>>, %arg2: memref<1x16x256xf32, #tpu.memory_space<vmem>>, %arg3: memref<1x16x256xf32, #tpu.memory_space<vmem>>, %arg4: memref<1x16x256xf32, #tpu.memory_space<vmem>>, %arg5: memref<1x16x256xf32, #tpu.memory_space<vmem>>) attributes {dimension_semantics = [#tpu.dimension_semantics<parallel>], iteration_bounds = array<i64: 1>, scalar_prefetch = 1 : i64, scratch_operands = 0 : i64, tpu.core_type = #tpu.core_type<tc>, window_params = [{transform_indices = @transform_0, window_bounds = array<i64: 1, 16, 256>}, {transform_indices = @transform_1, window_bounds = array<i64: 1, 16, 256>}, {transform_indices = @transform_2, window_bounds = array<i64: 1, 16, 256>}, {transform_indices = @transform_3, window_bounds = array<i64: 1, 16, 256>}]} {
    %c0 = arith.constant 0 : index
    %0 = memref.load %arg1[%c0] : memref<1xf32, #tpu.memory_space<smem>>
    %cst = arith.constant 1.000000e+00 : f32
    %1 = arith.divf %cst, %0 : f32
    %c0_0 = arith.constant 0 : index
    %c0_1 = arith.constant 0 : index
    %c0_2 = arith.constant 0 : index
    %2 = vector.load %arg2[%c0_0, %c0_1, %c0_2] : memref<1x16x256xf32, #tpu.memory_space<vmem>>, vector<1x16x256xf32>
    %3 = vector.shape_cast %2 : vector<1x16x256xf32> to vector<16x256xf32>
    %c0_3 = arith.constant 0 : index
    %c0_4 = arith.constant 0 : index
    %c0_5 = arith.constant 0 : index
    %4 = vector.load %arg3[%c0_3, %c0_4, %c0_5] : memref<1x16x256xf32, #tpu.memory_space<vmem>>, vector<1x16x256xf32>
    %5 = vector.shape_cast %4 : vector<1x16x256xf32> to vector<16x256xf32>
    %c0_6 = arith.constant 0 : index
    %c0_7 = arith.constant 0 : index
    %c0_8 = arith.constant 0 : index
    %6 = vector.load %arg4[%c0_6, %c0_7, %c0_8] : memref<1x16x256xf32, #tpu.memory_space<vmem>>, vector<1x16x256xf32>
    %7 = vector.shape_cast %6 : vector<1x16x256xf32> to vector<16x256xf32>
    %cst_9 = arith.constant dense<0.000000e+00> : vector<16x16xf32>
    %8 = tpu.matmul %3, %5, %cst_9 {dimension_numbers = #tpu.dot_dimension_numbers<[1], [1], [0], [0], [0, 0, 1, 0], [], []>} : vector<16x256xf32>, vector<16x256xf32>, vector<16x16xf32> -> vector<16x16xf32>
    %9 = vector.broadcast %1 : f32 to vector<16x16xf32>
    %10 = arith.mulf %8, %9 : vector<16x16xf32>
    %cst_10 = arith.constant dense<0xFF800000> : vector<16xf32>
    %11 = vector.multi_reduction <maximumf>, %10, %cst_10 [1] : vector<16x16xf32> to vector<16xf32>
    %12 = vector.shape_cast %11 : vector<16xf32> to vector<16x1xf32>
    %13 = vector.broadcast %12 : vector<16x1xf32> to vector<16x16xf32>
    %14 = arith.subf %10, %13 : vector<16x16xf32>
    %15 = math.exp %14 : vector<16x16xf32>
    %cst_11 = arith.constant dense<0.000000e+00> : vector<16xf32>
    %16 = vector.multi_reduction <add>, %15, %cst_11 [1] : vector<16x16xf32> to vector<16xf32>
    %17 = vector.shape_cast %16 : vector<16xf32> to vector<16x1xf32>
    %18 = tpu.reciprocal %17 {approx = true} : vector<16x1xf32> -> vector<16x1xf32>
    %19 = arith.mulf %17, %18 : vector<16x1xf32>
    %cst_12 = arith.constant 2.000000e+00 : f32
    %20 = vector.broadcast %cst_12 : f32 to vector<16x1xf32>
    %21 = arith.subf %20, %19 : vector<16x1xf32>
    %22 = arith.mulf %18, %21 : vector<16x1xf32>
    %23 = vector.broadcast %22 : vector<16x1xf32> to vector<16x16xf32>
    %24 = arith.mulf %15, %23 : vector<16x16xf32>
    %cst_13 = arith.constant dense<0.000000e+00> : vector<16x256xf32>
    %25 = tpu.matmul %24, %7, %cst_13 {dimension_numbers = #tpu.dot_dimension_numbers<[1], [0], [0], [1], [0, 0, 1, 1], [], []>} : vector<16x16xf32>, vector<16x256xf32>, vector<16x256xf32> -> vector<16x256xf32>
    %26 = vector.shape_cast %25 : vector<16x256xf32> to vector<1x16x256xf32>
    %c0_14 = arith.constant 0 : index
    %c0_15 = arith.constant 0 : index
    %c0_16 = arith.constant 0 : index
    %27 = vector.load %arg5[%c0_14, %c0_15, %c0_16] : memref<1x16x256xf32, #tpu.memory_space<vmem>>, vector<1x16x256xf32>
    tpu.vector_store %arg5[%c0_14, %c0_15, %c0_16], %26 {strides = array<i32>} : memref<1x16x256xf32, #tpu.memory_space<vmem>>, vector<1x16x256xf32>,
    return
  }
  func.func @transform_0(%arg0: i32, %arg1: memref<1xf32, #tpu.memory_space<smem>>) -> (i32, i32, i32) {
    %c0_i32 = arith.constant 0 : i32
    %c0_i32_0 = arith.constant 0 : i32
    %c0_i32_1 = arith.constant 0 : i32
    return %arg0, %c0_i32, %c0_i32_0 : i32, i32, i32
  }
  func.func @transform_1(%arg0: i32, %arg1: memref<1xf32, #tpu.memory_space<smem>>) -> (i32, i32, i32) {
    %c0_i32 = arith.constant 0 : i32
    %c0_i32_0 = arith.constant 0 : i32
    %c0_i32_1 = arith.constant 0 : i32
    return %arg0, %c0_i32, %c0_i32_0 : i32, i32, i32
  }
  func.func @transform_2(%arg0: i32, %arg1: memref<1xf32, #tpu.memory_space<smem>>) -> (i32, i32, i32) {
    %c0_i32 = arith.constant 0 : i32
    %c0_i32_0 = arith.constant 0 : i32
    %c0_i32_1 = arith.constant 0 : i32
    return %arg0, %c0_i32, %c0_i32_0 : i32, i32, i32
  }
  func.func @transform_3(%arg0: i32, %arg1: memref<1xf32, #tpu.memory_space<smem>>) -> (i32, i32, i32) {
    %c0_i32 = arith.constant 0 : i32
    %c0_i32_0 = arith.constant 0 : i32
    %c0_i32_1 = arith.constant 0 : i32
    return %arg0, %c0_i32, %c0_i32_0 : i32, i32, i32
  }
}

</mosaic_0001>

<llo_original>
// kernel: tpu_custom_call.1
$region0: #{tpu_custom_call.1}
  #allocation0 [shape = 'u32[]', space=smem, size = 0x4, offset = 0x4, fixed_abs, tag = 'smem constant byte address 0x4 - core index']
  #allocation1 [shape = 'u32[144,128]{1,0:T(1,128)}', space=vmem, size = 0x12000, scoped, tag = 'internal scratch']
  #allocation2 [shape = 's32[1]{0}', space=sflag, size = 0x4, scoped, tag = 'scoped memory for tpu_custom_call.1']
  #allocation3 [shape = 'f32[1]{0:T(128)S(6)}', space=smem, size = 0x200, scoped, tag = 'prefetched SMEM operand 0']
  %s0 = inlined_call_operand.<no memory space> [shape: f32[1], index: 0, kind: input, shape index: {}]
  %s1 = inlined_call_operand.hbm [shape: f32[1,16,256], index: 1, kind: input, shape index: {}]
  %s2 = inlined_call_operand.hbm [shape: f32[1,16,256], index: 2, kind: input, shape index: {}]
  %s3 = inlined_call_operand.hbm [shape: f32[1,16,256], index: 3, kind: input, shape index: {}]
  %s4 = inlined_call_operand.hbm [shape: f32[1,16,256], index: 4, kind: output, shape index: {}]
  %s5 = sld [smem:[#allocation0]]
  $region34: #{tpu_custom_call.1} parent=0
    _
  %s7 = ssub.s32 1, %s5
  %s8 = scalar_select 0, %s7, %s5
  %9 = sst [smem:[#allocation3]] %s0
  $region1: #{tpu_custom_call.1} parent=0
    #allocation4 [shape = 'u8[16384]{0}', space=vmem, size = 0x4000, scoped, tag = 'input window, operand 1, single buffered']
    #allocation5 [shape = 's32[1]{0}', space=sflag, size = 0x4, scoped, tag = 'scoped memory for tpu_custom_call.1']
    #allocation6 [shape = 's32[1]{0}', space=sflag, size = 0x4, scoped, tag = 'scoped memory for tpu_custom_call.1']
    #allocation7 [shape = 'u8[16384]{0}', space=vmem, size = 0x4000, scoped, tag = 'input window, operand 2, single buffered']
    #allocation8 [shape = 's32[1]{0}', space=sflag, size = 0x4, scoped, tag = 'scoped memory for tpu_custom_call.1']
    #allocation9 [shape = 'u8[16384]{0}', space=vmem, size = 0x4000, scoped, tag = 'input window, operand 3, single buffered']
    #allocation10 [shape = 'u8[16384]{0}', space=vmem, size = 0x4000, scoped, tag = 'output window, operand 0, single buffered']
    %10 = vsyncpa [#allocation5], 0
    %11 = vsyncpa [#allocation8], 0
    %12 = vsyncpa [#allocation6], 0
    // Predicated region
    $region2: #{tpu_custom_call.1} parent=1 // pred_check
      _
    $region3: #{tpu_custom_call.1} parent=1 // pred_check_branch
      %14 = sbr.rel (0) target = $region5
    $region4: #{tpu_custom_call.1} parent=1 // pred_region
      %s16 = ssub.s32 512, 512
      %17 = vsyncadd [#allocation5], %s16
      %s18 = sshll.u32 [#allocation4], 4
      %s19 = int_to_ptr.vmem [resolvable:$true] %s18
      %24 = dma.hbm_to_vmem [thread:$0]  %s1, 512, %s19, [#allocation5], 256, 256, 16
    $region5: #{tpu_custom_call.1} parent=1 // pred_fallthru
      _
    // Predicated region
    $region6: #{tpu_custom_call.1} parent=1 // pred_check
      _
    $region7: #{tpu_custom_call.1} parent=1 // pred_check_branch
      %26 = sbr.rel (0) target = $region9
    $region8: #{tpu_custom_call.1} parent=1 // pred_region
      %s28 = ssub.s32 512, 512
      %29 = vsyncadd [#allocation8], %s28
      %s30 = sshll.u32 [#allocation7], 4
      %s31 = int_to_ptr.vmem [resolvable:$true] %s30
      %36 = dma.hbm_to_vmem [thread:$0]  %s2, 512, %s31, [#allocation8], 256, 256, 16
    $region9: #{tpu_custom_call.1} parent=1 // pred_fallthru
      _
    // Predicated region
    $region10: #{tpu_custom_call.1} parent=1 // pred_check
      _
    $region11: #{tpu_custom_call.1} parent=1 // pred_check_branch
      %38 = sbr.rel (0) target = $region13
    $region12: #{tpu_custom_call.1} parent=1 // pred_region
      %s40 = ssub.s32 512, 512
      %41 = vsyncadd [#allocation8], %s40
      %s42 = sshll.u32 [#allocation9], 4
      %s43 = int_to_ptr.vmem [resolvable:$true] %s42
      %48 = dma.hbm_to_vmem [thread:$0]  %s3, 512, %s43, [#allocation8], 256, 256, 16
    $region13: #{tpu_custom_call.1} parent=1 // pred_fallthru
      _
    // Predicated region
    $region14: #{tpu_custom_call.1} parent=1 // pred_check
      _
    $region15: #{tpu_custom_call.1} parent=1 // pred_check_branch
      %50 = sbr.rel (0) target = $region17
    $region16: #{tpu_custom_call.1} parent=1 // pred_region
      %51 = dma.done [#allocation5], 512
    $region17: #{tpu_custom_call.1} parent=1 // pred_fallthru
      _
    // Predicated region
    $region18: #{tpu_custom_call.1} parent=1 // pred_check
      _
    $region19: #{tpu_custom_call.1} parent=1 // pred_check_branch
      %53 = sbr.rel (0) target = $region21
    $region20: #{tpu_custom_call.1} parent=1 // pred_region
      %54 = dma.done [#allocation8], 512
    $region21: #{tpu_custom_call.1} parent=1 // pred_fallthru
      _
    // Predicated region
    $region22: #{tpu_custom_call.1} parent=1 // pred_check
      _
    $region23: #{tpu_custom_call.1} parent=1 // pred_check_branch
      %56 = sbr.rel (0) target = $region25
    $region24: #{tpu_custom_call.1} parent=1 // pred_region
      %57 = dma.done [#allocation8], 512
    $region25: #{tpu_custom_call.1} parent=1 // pred_fallthru
      _
    %s58 = sld [smem:[#allocation3]]
    %v59 = vstv %s58
    %v60 = vrcp.pop %v59
    %s61 = vtos %v60
    %v62 = vld [vmem:[#allocation4] sm:$0xff]
    %v63 = vld [vmem:[#allocation4 + $0x8] sm:$0xff]
    %v64 = vld [vmem:[#allocation4 + $0x10] sm:$0xff]
    %v65 = vld [vmem:[#allocation4 + $0x18] sm:$0xff]
    %v66 = vld [vmem:[#allocation7] sm:$0xff]
    %v67 = vld [vmem:[#allocation7 + $0x8] sm:$0xff]
    %v68 = vld [vmem:[#allocation7 + $0x10] sm:$0xff]
    %v69 = vld [vmem:[#allocation7 + $0x18] sm:$0xff]
    %v70 = vld [vmem:[#allocation9] sm:$0xff]
    %v71 = vld [vmem:[#allocation9 + $0x8] sm:$0xff]
    %v72 = vld [vmem:[#allocation9 + $0x10] sm:$0xff]
    %v73 = vld [vmem:[#allocation9 + $0x18] sm:$0xff]
    %74 = vmatprep.subr.mxu0 %v67
    %75 = vmatpush1.xpose.msra.mxu0 %v66
    %76 = vmatprep.subr.mxu0 %v69
    %77 = vmatpush1.xpose.msra.mxu0 %v68
    %78 = vmatprep.subr.mxu0 0.0
    %79 = vmatpush1.xpose.msra.mxu0 0.0
    %80 = vmatprep.subr.mxu0 0.0
    %81 = vmatpush1.xpose.msra.mxu0 0.0
    %82 = vmatprep.subr.mxu0 0.0
    %83 = vmatpush1.xpose.msra.mxu0 0.0
    %84 = vmatprep.subr.mxu0 0.0
    %85 = vmatpush1.xpose.msra.mxu0 0.0
    %86 = vmatprep.subr.mxu0 0.0
    %87 = vmatpush1.xpose.msra.mxu0 0.0
    %88 = vmatprep.subr.mxu0 0.0
    %89 = vmatpush1.xpose.msra.mxu0 0.0
    %90 = vmatprep.subr.mxu0 0.0
    %91 = vmatpush1.xpose.msra.mxu0 0.0
    %92 = vmatprep.subr.mxu0 0.0
    %93 = vmatpush1.xpose.msra.mxu0 0.0
    %94 = vmatprep.subr.mxu0 0.0
    %95 = vmatpush1.xpose.msra.mxu0 0.0
    %96 = vmatprep.subr.mxu0 0.0
    %97 = vmatpush1.xpose.msra.mxu0 0.0
    %98 = vmatprep.subr.mxu0 0.0
    %99 = vmatpush1.xpose.msra.mxu0 0.0
    %100 = vmatprep.subr.mxu0 0.0
    %101 = vmatpush1.xpose.msra.mxu0 0.0
    %102 = vmatprep.subr.mxu0 0.0
    %103 = vmatpush1.xpose.msra.mxu0 0.0
    %104 = vmatprep.subr.mxu0 0.0
    %105 = vmatpush1.xpose.msra.mxu0 0.0
    %106 = vmatprep.subr.mxu0 0.0
    %107 = vmatpush1.xpose.msra.mxu0 0.0
    %108 = vmatprep.subr.mxu0 0.0
    %109 = vmatpush1.xpose.msra.mxu0 0.0
    %110 = vmatprep.subr.mxu0 0.0
    %111 = vmatpush1.xpose.msra.mxu0 0.0
    %112 = vmatprep.subr.mxu0 0.0
    %113 = vmatpush1.xpose.msra.mxu0 0.0
    %114 = vmatprep.subr.mxu0 0.0
    %115 = vmatpush1.xpose.msra.mxu0 0.0
    %116 = vmatprep.subr.mxu0 0.0
    %117 = vmatpush1.xpose.msra.mxu0 0.0
    %118 = vmatprep.subr.mxu0 0.0
    %119 = vmatpush1.xpose.msra.mxu0 0.0
    %120 = vmatprep.subr.mxu0 0.0
    %121 = vmatpush1.xpose.msra.mxu0 0.0
    %122 = vmatprep.subr.mxu0 0.0
    %123 = vmatpush1.xpose.msra.mxu0 0.0
    %124 = vmatprep.subr.mxu0 0.0
    %125 = vmatpush1.xpose.msra.mxu0 0.0
    %126 = vmatprep.subr.mxu0 0.0
    %127 = vmatpush1.xpose.msra.mxu0 0.0
    %128 = vmatprep.subr.mxu0 0.0
    %129 = vmatpush1.xpose.msra.mxu0 0.0
    %130 = vmatprep.subr.mxu0 0.0
    %131 = vmatpush1.xpose.msra.mxu0 0.0
    %132 = vmatprep.subr.mxu0 0.0
    %133 = vmatpush1.xpose.msra.mxu0 0.0
    %134 = vmatprep.subr.mxu0 0.0
    %135 = vmatpush1.xpose.msra.mxu0 0.0
    %136 = vmatprep.subr.mxu0 0.0
    %137 = vmatpush1.xpose.msra.mxu0 0.0
    %138 = vmatprep.mubr.f32.mxu0 %v63
    %139 = vmatmul.mubr.f32.gmra.mrb[0].mxu0 %v62
    %v140 = vpop.f32.mrb[0].mxu0
    %v141 = vadd.f32 0.0, %v140
    %v142 = vpop.f32.mrb[0].mxu0
    %143 = vmatprep.mubr.f32.mxu0 %v65
    %144 = vmatmul.mubr.f32.gmra.mrb[0].mxu0 %v64
    %v145 = vpop.f32.mrb[0].mxu0
    %v146 = vadd.f32 0.0, %v145
    %v147 = vpop.f32.mrb[0].mxu0
    %148 = vdwg.mxu0
    %v149 = vstv %s61
    %v150 = vmul.f32 %v141, %v149
    %v151 = vmul.f32 %v146, %v149
    %vm152 = vcmask 130048
    %v153 = vsel %vm152, %v150, -inf
    %154 = vmax.xlane.f32.xlu0 %v153
    %v155 = vpop.xlane.xlu0 %154
    %v156 = vsel %vm152, %v151, -inf
    %157 = vmax.xlane.f32.xlu0 %v156
    %v158 = vpop.xlane.xlu0 %157
    %v159 = vsub.f32 %v150, %v155
    %v160 = vsub.f32 %v151, %v158
    %v161 = vmul.f32 %v159, 1.442695
    %v162 = vpow.pop %v161
    %v163 = vmul.f32 %v160, 1.442695
    %v164 = vpow.pop %v163
    %v165 = vsel %vm152, %v162, 0.0
    %166 = vadd.xlane.f32.xlu0 %v165
    %v167 = vpop.xlane.xlu0 %166
    %v168 = vsel %vm152, %v164, 0.0
    %169 = vadd.xlane.f32.xlu0 %v168
    %v170 = vpop.xlane.xlu0 %169
    %v171 = vrcp.pop %v167
    %v172 = vrcp.pop %v170
    %v173 = vmul.f32 %v167, %v171
    %v174 = vmul.f32 %v170, %v172
    %v175 = vsub.f32 2.0, %v173
    %v176 = vsub.f32 2.0, %v174
    %v177 = vmul.f32 %v171, %v175
    %v178 = vmul.f32 %v172, %v176
    %v179 = vmul.f32 %v162, %v177
    %v180 = vmul.f32 %v164, %v178
    %v182 = vsel %vm152, %v179, 0
    %v185 = vsel %vm152, %v180, 0
    %187 = vmatprep.subr.mxu0 %v71
    %188 = vmatpush1.msra.mxu0 %v70
    %189 = vmatprep.subr.mxu0 %v73
    %190 = vmatpush1.msra.mxu0 %v72
    %191 = vmatprep.subr.mxu0 0.0
    %192 = vmatpush1.msra.mxu0 0.0
    %193 = vmatprep.subr.mxu0 0.0
    %194 = vmatpush1.msra.mxu0 0.0
    %195 = vmatprep.subr.mxu0 0.0
    %196 = vmatpush1.msra.mxu0 0.0
    %197 = vmatprep.subr.mxu0 0.0
    %198 = vmatpush1.msra.mxu0 0.0
    %199 = vmatprep.subr.mxu0 0.0
    %200 = vmatpush1.msra.mxu0 0.0
    %201 = vmatprep.subr.mxu0 0.0
    %202 = vmatpush1.msra.mxu0 0.0
    %203 = vmatprep.subr.mxu0 0.0
    %204 = vmatpush1.msra.mxu0 0.0
    %205 = vmatprep.subr.mxu0 0.0
    %206 = vmatpush1.msra.mxu0 0.0
    %207 = vmatprep.subr.mxu0 0.0
    %208 = vmatpush1.msra.mxu0 0.0
    %209 = vmatprep.subr.mxu0 0.0
    %210 = vmatpush1.msra.mxu0 0.0
    %211 = vmatprep.subr.mxu0 0.0
    %212 = vmatpush1.msra.mxu0 0.0
    %213 = vmatprep.subr.mxu0 0.0
    %214 = vmatpush1.msra.mxu0 0.0
    %215 = vmatprep.subr.mxu0 0.0
    %216 = vmatpush1.msra.mxu0 0.0
    %217 = vmatprep.subr.mxu0 0.0
    %218 = vmatpush1.msra.mxu0 0.0
    %219 = vmatprep.subr.mxu0 0.0
    %220 = vmatpush1.msra.mxu0 0.0
    %221 = vmatprep.subr.mxu0 0.0
    %222 = vmatpush1.msra.mxu0 0.0
    %223 = vmatprep.subr.mxu0 0.0
    %224 = vmatpush1.msra.mxu0 0.0
    %225 = vmatprep.subr.mxu0 0.0
    %226 = vmatpush1.msra.mxu0 0.0
    %227 = vmatprep.subr.mxu0 0.0
    %228 = vmatpush1.msra.mxu0 0.0
    %229 = vmatprep.subr.mxu0 0.0
    %230 = vmatpush1.msra.mxu0 0.0
    %231 = vmatprep.subr.mxu0 0.0
    %232 = vmatpush1.msra.mxu0 0.0
    %233 = vmatprep.subr.mxu0 0.0
    %234 = vmatpush1.msra.mxu0 0.0
    %235 = vmatprep.subr.mxu0 0.0
    %236 = vmatpush1.msra.mxu0 0.0
    %237 = vmatprep.subr.mxu0 0.0
    %238 = vmatpush1.msra.mxu0 0.0
    %239 = vmatprep.subr.mxu0 0.0
    %240 = vmatpush1.msra.mxu0 0.0
    %241 = vmatprep.subr.mxu0 0.0
    %242 = vmatpush1.msra.mxu0 0.0
    %243 = vmatprep.subr.mxu0 0.0
    %244 = vmatpush1.msra.mxu0 0.0
    %245 = vmatprep.subr.mxu0 0.0
    %246 = vmatpush1.msra.mxu0 0.0
    %247 = vmatprep.subr.mxu0 0.0
    %248 = vmatpush1.msra.mxu0 0.0
    %249 = vmatprep.subr.mxu0 0.0
    %250 = vmatpush1.msra.mxu0 0.0
    %251 = vmatprep.mubr.f32.mxu0 0.0
    %252 = vmatmul.mubr.f32.gmra.mrb[0].mxu0 %v182
    %v253 = vpop.f32.mrb[0].mxu0
    %v254 = vadd.f32 0.0, %v253
    %v255 = vpop.f32.mrb[0].mxu0
    %v256 = vadd.f32 0.0, %v255
    %257 = vmatprep.mubr.f32.mxu0 0.0
    %258 = vmatmul.mubr.f32.gmra.mrb[0].mxu0 %v185
    %v259 = vpop.f32.mrb[0].mxu0
    %v260 = vadd.f32 0.0, %v259
    %v261 = vpop.f32.mrb[0].mxu0
    %v262 = vadd.f32 0.0, %v261
    %263 = vdwg.mxu0
    %264 = vst [vmem:[#allocation10] sm:$0xff] %v254
    %265 = vst [vmem:[#allocation10 + $0x8] sm:$0xff] %v256
    %266 = vst [vmem:[#allocation10 + $0x10] sm:$0xff] %v260
    %267 = vst [vmem:[#allocation10 + $0x18] sm:$0xff] %v262
    // Predicated region
    $region26: #{tpu_custom_call.1} parent=1 // pred_check
      _
    $region27: #{tpu_custom_call.1} parent=1 // pred_check_branch
      %269 = sbr.rel (0) target = $region29
    $region28: #{tpu_custom_call.1} parent=1 // pred_region
      %s271 = ssub.s32 512, 512
      %272 = vsyncadd [#allocation6], %s271
      %s273 = sshll.u32 [#allocation10], 4
      %s274 = int_to_ptr.vmem [resolvable:$true] %s273
      %279 = dma.vmem_to_hbm [thread:$0]  %s274, 512, %s4, [#allocation6], 256, 256, 16
    $region29: #{tpu_custom_call.1} parent=1 // pred_fallthru
      _
    // Predicated region
    $region30: #{tpu_custom_call.1} parent=1 // pred_check
      _
    $region31: #{tpu_custom_call.1} parent=1 // pred_check_branch
      %281 = sbr.rel (0) target = $region33
    $region32: #{tpu_custom_call.1} parent=1 // pred_region
      %282 = dma.done [#allocation6], 512
    $region33: #{tpu_custom_call.1} parent=1 // pred_fallthru
      _
    %283 = vsyncpa [#allocation5], 1
    %284 = vsyncpa [#allocation8], 1
    %285 = vsyncpa [#allocation6], 1

</llo_original>
